<compile_context>
chip_gen: v7x
topology: tpu7x:2x2x1
jax: 0.10.0
libtpu: 0.0.40
codegen_flags: <defaults>
</compile_context>

<pallas_src>
import functools

import jax
import jax.numpy as jnp
from jax import lax
from jax.experimental import pallas as pl
from jax.experimental.pallas import tpu as pltpu


def _posenet_kernel(pT_ref, w1_ref, b1_ref, w2_ref, b2_ref, o_ref, *, nb, hw):
    """Fused im2col-conv3x3 + bias + ReLU + 1x1 conv + bias for `nb` images.

    pT_ref : (9*C_in, nb*hw)  bf16  im2col patches, pixels on the lane axis
    w1_ref : (C_mid, 9*C_in)  bf16  backbone conv weight (K-ordering c_in,ky,kx)
    b1_ref : (C_mid, 1)       f32
    w2_ref : (C_out, C_mid)   bf16  head 1x1 conv weight
    b2_ref : (C_out, 1)       f32
    o_ref  : (nb, C_out, hw)  f32   per-image channel-major output (== NCHW)
    """
    # 3x3 conv == one im2col matmul on the MXU, f32 accumulation.
    hidden = jnp.dot(w1_ref[...], pT_ref[...], preferred_element_type=jnp.float32)
    hidden = jnp.maximum(hidden + b1_ref[...], 0.0)            # bias + ReLU (VPU)
    # 1x1 conv == plain channel matmul.
    out = jnp.dot(w2_ref[...], hidden.astype(jnp.bfloat16),
                  preferred_element_type=jnp.float32) + b2_ref[...]
    # Lane-aligned, unmasked per-image stores (hw is a multiple of 128 here).
    for n in range(nb):                                        # static unroll
        o_ref[n] = out[:, n * hw:(n + 1) * hw].astype(o_ref.dtype)


def _images_per_step(n, hw, target_lanes=2048):
    """How many images to fold into one grid step (block, not grid)."""
    nb = max(1, min(n, max(1, target_lanes // hw)))
    while n % nb != 0:
        nb -= 1
    if (nb * hw) % 128 != 0:        # keep input blocks lane-aligned; else 1 block
        nb = n
    return nb


def posenet_1branch(x_nchw, params):
    """Forward pass matching PoseNet_1branch.forward semantics.

    x_nchw : (N, C_in, H, W) float32 (PyTorch NCHW convention)
    returns (heatmap (N, 4, H, W), tagmap (N, C_out-4, H, W))
    """
    w1, b1, w2, b2 = params["w1"], params["b1"], params["w2"], params["b2"]
    N, C_in, H, W = x_nchw.shape
    C_mid = w1.shape[0]
    C_out = w2.shape[0]
    HW = H * W
    K1 = 9 * C_in

    # ---- glue (pure layout, done once by XLA): im2col, channel-major ----
    # patchesT[c*9 + ky*3 + kx, n*HW + h*W + w] = x_pad[n, c, h+ky, w+kx]
    x_pad = jnp.pad(x_nchw, ((0, 0), (0, 0), (1, 1), (1, 1)))
    taps = [x_pad[:, :, ky:ky + H, kx:kx + W] for ky in range(3) for kx in range(3)]
    pT = jnp.transpose(jnp.stack(taps, axis=2), (1, 2, 0, 3, 4)).reshape(K1, N * HW)
    pT = pT.astype(jnp.bfloat16)                          # bf16 MXU operand
    w1_k = w1.reshape(C_mid, K1).astype(jnp.bfloat16)     # (c_in,ky,kx) K-ordering
    w2_k = w2.reshape(C_out, C_mid).astype(jnp.bfloat16)
    b1_k = b1.reshape(C_mid, 1)
    b2_k = b2.reshape(C_out, 1)

    nb = _images_per_step(N, HW)
    kernel = functools.partial(_posenet_kernel, nb=nb, hw=HW)

    out = pl.pallas_call(
        kernel,
        out_shape=jax.ShapeDtypeStruct((N, C_out, HW), jnp.float32),
        grid=(N // nb,),
        in_specs=[
            pl.BlockSpec((K1, nb * HW), lambda g: (0, g)),     # patches (cols = imgs)
            pl.BlockSpec((C_mid, K1), lambda g: (0, 0)),       # W1  (broadcast)
            pl.BlockSpec((C_mid, 1), lambda g: (0, 0)),        # b1
            pl.BlockSpec((C_out, C_mid), lambda g: (0, 0)),    # W2
            pl.BlockSpec((C_out, 1), lambda g: (0, 0)),        # b2
        ],
        out_specs=pl.BlockSpec((nb, C_out, HW), lambda g: (g, 0, 0)),
        compiler_params=pltpu.CompilerParams(
            dimension_semantics=("parallel",),
            vmem_limit_bytes=32 * 1024 * 1024,
        ),
    )(pT, w1_k, b1_k, w2_k, b2_k)

    # Output is already channel-major per image: only a free reshape remains.
    out = out.reshape(N, C_out, H, W)
    heatmap = out[:, :4]
    tagmap = out[:, 4:]
    return heatmap, tagmap


def make_params(key, C_in, C_mid, C_out):
    k1, k2, k3, k4 = jax.random.split(key, 4)
    return {
        "w1": 0.1 * jax.random.normal(k1, (C_mid, C_in, 3, 3), jnp.float32),
        "b1": 0.1 * jax.random.normal(k2, (C_mid,), jnp.float32),
        "w2": 0.1 * jax.random.normal(k3, (C_out, C_mid, 1, 1), jnp.float32),
        "b2": 0.1 * jax.random.normal(k4, (C_out,), jnp.float32),
    }


if __name__ == "__main__":
    N, C_in, H, W = 2, 4, 16, 16
    C_mid = 32
    n_tag = 4
    C_out = 4 + n_tag   # heatmap takes first 4 channels, tagmap the rest

    key = jax.random.PRNGKey(0)
    kx, kp = jax.random.split(key)
    x = jax.random.normal(kx, (N, C_in, H, W), jnp.float32)
    params = make_params(kp, C_in, C_mid, C_out)

    heatmap, tagmap = jax.jit(posenet_1branch)(x, params)
    jax.block_until_ready((heatmap, tagmap))

    assert heatmap.shape == (N, 4, H, W)
    assert tagmap.shape == (N, C_out - 4, H, W)

    # Independent f32 reference matching the PyTorch forward semantics.
    ref = lax.conv_general_dilated(
        x, params["w1"], (1, 1), "SAME",
        dimension_numbers=("NCHW", "OIHW", "NCHW"),
        precision=lax.Precision.HIGHEST) + params["b1"][None, :, None, None]
    ref = jnp.maximum(ref, 0.0)
    ref = lax.conv_general_dilated(
        ref, params["w2"], (1, 1), "SAME",
        dimension_numbers=("NCHW", "OIHW", "NCHW"),
        precision=lax.Precision.HIGHEST) + params["b2"][None, :, None, None]
    got = jnp.concatenate([heatmap, tagmap], axis=1)
    max_err = float(jnp.max(jnp.abs(got - ref)))
    assert max_err < 5e-2, max_err   # bf16 MXU operands, f32 accumulation

    print("KERNEL_OK")
</pallas_src>

<mosaic_0001>
module attributes {stable_mosaic.version = 11 : i64} {
  func.func @_posenet_kernel(%arg0: i32, %arg1: memref<36x512xbf16, #tpu.memory_space<vmem>>, %arg2: memref<32x36xbf16, #tpu.memory_space<vmem>>, %arg3: memref<32x1xf32, #tpu.memory_space<vmem>>, %arg4: memref<8x32xbf16, #tpu.memory_space<vmem>>, %arg5: memref<8x1xf32, #tpu.memory_space<vmem>>, %arg6: memref<2x8x256xf32, #tpu.memory_space<vmem>>) attributes {dimension_semantics = [#tpu.dimension_semantics<parallel>], iteration_bounds = array<i64: 1>, scalar_prefetch = 0 : i64, scratch_operands = 0 : i64, tpu.core_type = #tpu.core_type<tc>, window_params = [{transform_indices = @transform_0, window_bounds = array<i64: 36, 512>}, {pipeline_mode = #tpu.pipeline_mode<synchronous>, transform_indices = @transform_1, window_bounds = array<i64: 32, 36>}, {pipeline_mode = #tpu.pipeline_mode<synchronous>, transform_indices = @transform_2, window_bounds = array<i64: 32, 1>}, {pipeline_mode = #tpu.pipeline_mode<synchronous>, transform_indices = @transform_3, window_bounds = array<i64: 8, 32>}, {pipeline_mode = #tpu.pipeline_mode<synchronous>, transform_indices = @transform_4, window_bounds = array<i64: 8, 1>}, {transform_indices = @transform_5, window_bounds = array<i64: 2, 8, 256>}]} {
    %c0 = arith.constant 0 : index
    %c0_0 = arith.constant 0 : index
    %0 = vector.load %arg2[%c0, %c0_0] : memref<32x36xbf16, #tpu.memory_space<vmem>>, vector<32x36xbf16>
    %c0_1 = arith.constant 0 : index
    %c0_2 = arith.constant 0 : index
    %1 = vector.load %arg1[%c0_1, %c0_2] : memref<36x512xbf16, #tpu.memory_space<vmem>>, vector<36x512xbf16>
    %cst = arith.constant dense<0.000000e+00> : vector<32x512xf32>
    %2 = tpu.matmul %0, %1, %cst {dimension_numbers = #tpu.dot_dimension_numbers<[1], [0], [0], [1], [0, 0, 1, 1], [], []>} : vector<32x36xbf16>, vector<36x512xbf16>, vector<32x512xf32> -> vector<32x512xf32>
    %c0_3 = arith.constant 0 : index
    %c0_4 = arith.constant 0 : index
    %3 = vector.load %arg3[%c0_3, %c0_4] : memref<32x1xf32, #tpu.memory_space<vmem>>, vector<32x1xf32>
    %4 = vector.broadcast %3 : vector<32x1xf32> to vector<32x512xf32>
    %5 = arith.addf %2, %4 : vector<32x512xf32>
    %cst_5 = arith.constant 0.000000e+00 : f32
    %6 = vector.broadcast %cst_5 : f32 to vector<32x512xf32>
    %7 = arith.maximumf %5, %6 : vector<32x512xf32>
    %c0_6 = arith.constant 0 : index
    %c0_7 = arith.constant 0 : index
    %8 = vector.load %arg4[%c0_6, %c0_7] : memref<8x32xbf16, #tpu.memory_space<vmem>>, vector<8x32xbf16>
    %9 = arith.truncf %7 : vector<32x512xf32> to vector<32x512xbf16>
    %cst_8 = arith.constant dense<0.000000e+00> : vector<8x512xf32>
    %10 = tpu.matmul %8, %9, %cst_8 {dimension_numbers = #tpu.dot_dimension_numbers<[1], [0], [0], [1], [0, 0, 1, 1], [], []>} : vector<8x32xbf16>, vector<32x512xbf16>, vector<8x512xf32> -> vector<8x512xf32>
    %c0_9 = arith.constant 0 : index
    %c0_10 = arith.constant 0 : index
    %11 = vector.load %arg5[%c0_9, %c0_10] : memref<8x1xf32, #tpu.memory_space<vmem>>, vector<8x1xf32>
    %12 = vector.broadcast %11 : vector<8x1xf32> to vector<8x512xf32>
    %13 = arith.addf %10, %12 : vector<8x512xf32>
    %14 = vector.extract_strided_slice %13 {offsets = [0, 0], sizes = [8, 256], strides = [1, 1]} : vector<8x512xf32> to vector<8x256xf32>
    %c0_11 = arith.constant 0 : index
    %c0_12 = arith.constant 0 : index
    %c0_13 = arith.constant 0 : index
    %15 = vector.load %arg6[%c0_11, %c0_12, %c0_13] : memref<2x8x256xf32, #tpu.memory_space<vmem>>, vector<1x8x256xf32>
    %16 = vector.shape_cast %15 : vector<1x8x256xf32> to vector<8x256xf32>
    %17 = vector.shape_cast %14 : vector<8x256xf32> to vector<1x8x256xf32>
    tpu.vector_store %arg6[%c0_11, %c0_12, %c0_13], %17 {strides = array<i32>} : memref<2x8x256xf32, #tpu.memory_space<vmem>>, vector<1x8x256xf32>,
    %18 = vector.extract_strided_slice %13 {offsets = [0, 256], sizes = [8, 256], strides = [1, 1]} : vector<8x512xf32> to vector<8x256xf32>
    %c1 = arith.constant 1 : index
    %c0_14 = arith.constant 0 : index
    %c0_15 = arith.constant 0 : index
    %19 = vector.load %arg6[%c1, %c0_14, %c0_15] : memref<2x8x256xf32, #tpu.memory_space<vmem>>, vector<1x8x256xf32>
    %20 = vector.shape_cast %19 : vector<1x8x256xf32> to vector<8x256xf32>
    %21 = vector.shape_cast %18 : vector<8x256xf32> to vector<1x8x256xf32>
    tpu.vector_store %arg6[%c1, %c0_14, %c0_15], %21 {strides = array<i32>} : memref<2x8x256xf32, #tpu.memory_space<vmem>>, vector<1x8x256xf32>,
    return
  }
  func.func @transform_0(%arg0: i32) -> (i32, i32) {
    %c0_i32 = arith.constant 0 : i32
    %c0_i32_0 = arith.constant 0 : i32
    return %c0_i32, %arg0 : i32, i32
  }
  func.func @transform_1(%arg0: i32) -> (i32, i32) {
    %c0_i32 = arith.constant 0 : i32
    %c0_i32_0 = arith.constant 0 : i32
    %c0_i32_1 = arith.constant 0 : i32
    return %c0_i32, %c0_i32_0 : i32, i32
  }
  func.func @transform_2(%arg0: i32) -> (i32, i32) {
    %c0_i32 = arith.constant 0 : i32
    %c0_i32_0 = arith.constant 0 : i32
    %c0_i32_1 = arith.constant 0 : i32
    return %c0_i32, %c0_i32_0 : i32, i32
  }
  func.func @transform_3(%arg0: i32) -> (i32, i32) {
    %c0_i32 = arith.constant 0 : i32
    %c0_i32_0 = arith.constant 0 : i32
    %c0_i32_1 = arith.constant 0 : i32
    return %c0_i32, %c0_i32_0 : i32, i32
  }
  func.func @transform_4(%arg0: i32) -> (i32, i32) {
    %c0_i32 = arith.constant 0 : i32
    %c0_i32_0 = arith.constant 0 : i32
    %c0_i32_1 = arith.constant 0 : i32
    return %c0_i32, %c0_i32_0 : i32, i32
  }
  func.func @transform_5(%arg0: i32) -> (i32, i32, i32) {
    %c0_i32 = arith.constant 0 : i32
    %c0_i32_0 = arith.constant 0 : i32
    %c0_i32_1 = arith.constant 0 : i32
    return %arg0, %c0_i32, %c0_i32_0 : i32, i32, i32
  }
}

</mosaic_0001>

<llo_original>
// kernel: posenet_1branch.1
$region0: #{posenet_1branch.1}
  #allocation0 [shape = 'u32[]', space=smem, size = 0x4, offset = 0x4, fixed_abs, tag = 'smem constant byte address 0x4 - core index']
  #allocation1 [shape = 'u32[144,128]{1,0:T(1,128)}', space=vmem, size = 0x12000, scoped, tag = 'internal scratch']
  %s0 = inlined_call_operand.vmem [shape: bf16[36,512], index: 0, kind: input, shape index: {}]
  %s1 = inlined_call_operand.vmem [shape: bf16[32,36], index: 1, kind: input, shape index: {}]
  %s2 = inlined_call_operand.vmem [shape: f32[32,1], index: 2, kind: input, shape index: {}]
  %s3 = inlined_call_operand.vmem [shape: bf16[8,32], index: 3, kind: input, shape index: {}]
  %s4 = inlined_call_operand.vmem [shape: f32[8,1], index: 4, kind: input, shape index: {}]
  %s5 = inlined_call_operand.vmem [shape: f32[2,8,256], index: 5, kind: output, shape index: {}]
  %s6 = sld [smem:[#allocation0]]
  $region30: #{posenet_1branch.1} parent=0
    _
  %s8 = ssub.s32 1, %s6
  %s9 = scalar_select 0, %s8, %s6
  // Predicated region
  $region2: #{posenet_1branch.1} parent=0 // pred_check
    _
  $region3: #{posenet_1branch.1} parent=0 // pred_check_branch
    %11 = sbr.rel (0) target = $region5
  $region4: #{posenet_1branch.1} parent=0 // pred_region
    _
  $region5: #{posenet_1branch.1} parent=0 // pred_fallthru
    _
  // Predicated region
  $region6: #{posenet_1branch.1} parent=0 // pred_check
    _
  $region7: #{posenet_1branch.1} parent=0 // pred_check_branch
    %13 = sbr.rel (0) target = $region9
  $region8: #{posenet_1branch.1} parent=0 // pred_region
    _
  $region9: #{posenet_1branch.1} parent=0 // pred_fallthru
    _
  // Predicated region
  $region10: #{posenet_1branch.1} parent=0 // pred_check
    _
  $region11: #{posenet_1branch.1} parent=0 // pred_check_branch
    %15 = sbr.rel (0) target = $region13
  $region12: #{posenet_1branch.1} parent=0 // pred_region
    _
  $region13: #{posenet_1branch.1} parent=0 // pred_fallthru
    _
  // Predicated region
  $region14: #{posenet_1branch.1} parent=0 // pred_check
    _
  $region15: #{posenet_1branch.1} parent=0 // pred_check_branch
    %17 = sbr.rel (0) target = $region17
  $region16: #{posenet_1branch.1} parent=0 // pred_region
    _
  $region17: #{posenet_1branch.1} parent=0 // pred_fallthru
    _
  // Predicated region
  $region18: #{posenet_1branch.1} parent=0 // pred_check
    _
  $region19: #{posenet_1branch.1} parent=0 // pred_check_branch
    %19 = sbr.rel (0) target = $region21
  $region20: #{posenet_1branch.1} parent=0 // pred_region
    _
  $region21: #{posenet_1branch.1} parent=0 // pred_fallthru
    _
  %v21 = vld [vmem:[%s1] sm:$0xf]
  %v22 = vld [vmem:[%s1 + $0x4] sm:$0xf]
  %v23 = vld [vmem:[%s1 + $0x8] sm:$0xf]
  %v24 = vld [vmem:[%s1 + $0xc] sm:$0xf]
  %v25 = vld [vmem:[%s0] sm:$0xff]
  %v26 = vld [vmem:[%s0 + $0x8] sm:$0xff]
  %v27 = vld [vmem:[%s0 + $0x10] sm:$0xff]
  %v28 = vld [vmem:[%s0 + $0x18] sm:$0xff]
  %v29 = vld [vmem:[%s0 + $0x20] sm:$0xff]
  %v30 = vld [vmem:[%s0 + $0x28] sm:$0xff]
  %v31 = vld [vmem:[%s0 + $0x30] sm:$0xff]
  %v32 = vld [vmem:[%s0 + $0x38] sm:$0xff]
  %v33 = vld [vmem:[%s0 + $0x40] sm:$0x33]
  %v34 = vld [vmem:[%s0 + $0x48] sm:$0x33]
  %v35 = vld [vmem:[%s2] sm:$0xff]
  %v36 = vld [vmem:[%s2 + $0x8] sm:$0xff]
  %v37 = vld [vmem:[%s2 + $0x10] sm:$0xff]
  %v38 = vld [vmem:[%s2 + $0x18] sm:$0xff]
  %40 = vset.pattern.permute.xlu0 0
  %41 = vperm.xlu0 %40, %v35
  %v42 = vpop.permute.xlu0 %41
  %45 = vset.pattern.permute.xlu0 0
  %46 = vperm.xlu0 %45, %v36
  %v47 = vpop.permute.xlu0 %46
  %50 = vset.pattern.permute.xlu0 0
  %51 = vperm.xlu0 %50, %v37
  %v52 = vpop.permute.xlu0 %51
  %55 = vset.pattern.permute.xlu0 0
  %56 = vperm.xlu0 %55, %v38
  %v57 = vpop.permute.xlu0 %56
  %v63 = vunpack.c.l.b16 %v21
  %v64 = vunpack.c.l.b16 %v22
  %v65 = vunpack.c.l.b16 %v23
  %v66 = vunpack.c.l.b16 %v24
  %v67 = vpack.c.b16 %v64, %v63
  %v68 = vpack.c.b16 %v66, %v65
  %v79 = vunpack.c.l.b16 %v25
  %v80 = vunpack.c.h.b16 %v25
  %v81 = vunpack.c.l.b16 %v26
  %v82 = vunpack.c.h.b16 %v26
  %v83 = vunpack.c.l.b16 %v27
  %v84 = vunpack.c.h.b16 %v27
  %v85 = vunpack.c.l.b16 %v28
  %v86 = vunpack.c.h.b16 %v28
  %v87 = vunpack.c.l.b16 %v29
  %v88 = vunpack.c.h.b16 %v29
  %v89 = vunpack.c.l.b16 %v30
  %v90 = vunpack.c.h.b16 %v30
  %v91 = vunpack.c.l.b16 %v31
  %v92 = vunpack.c.h.b16 %v31
  %v93 = vunpack.c.l.b16 %v32
  %v94 = vunpack.c.h.b16 %v32
  %v95 = vunpack.c.l.b16 %v33
  %v96 = vunpack.c.h.b16 %v33
  %v97 = vunpack.c.l.b16 %v34
  %v98 = vunpack.c.h.b16 %v34
  %v99 = vpack.c.b16 %v83, %v79
  %v100 = vpack.c.b16 %v84, %v80
  %v101 = vpack.c.b16 %v85, %v81
  %v102 = vpack.c.b16 %v86, %v82
  %v103 = vpack.c.b16 %v91, %v87
  %v104 = vpack.c.b16 %v92, %v88
  %v105 = vpack.c.b16 %v93, %v89
  %v106 = vpack.c.b16 %v94, %v90
  %v107 = vpack.c.b16 %v95, %v95
  %v108 = vpack.c.b16 %v96, %v96
  %v109 = vpack.c.b16 %v97, %v97
  %v110 = vpack.c.b16 %v98, %v98
  %vm119 = vcmask 293888
  %v121 = vsel %vm119, %v67, 0
  %v124 = vsel %vm119, %v68, 0
  %vm126 = vcmask 1041408
  %v128 = vsel %vm126, %v107, 0
  %v131 = vsel %vm126, %v108, 0
  %v134 = vsel %vm126, %v109, 0
  %v137 = vsel %vm126, %v110, 0
  %139 = vmatprep.subr.bf16.mxu0 %v100
  %140 = vmatpush1.bf16.msra.mxu0 %v99
  %141 = vmatprep.subr.bf16.mxu0 %v104
  %142 = vmatpush1.bf16.msra.mxu0 %v103
  %143 = vmatprep.subr.bf16.mxu0 %v131
  %144 = vmatpush1.bf16.msra.mxu0 %v128
  %145 = vmatprep.subr.bf16.mxu0 0
  %146 = vmatpush1.bf16.msra.mxu0 0
  %147 = vmatprep.subr.bf16.mxu0 0
  %148 = vmatpush1.bf16.msra.mxu0 0
  %149 = vmatprep.subr.bf16.mxu0 0
  %150 = vmatpush1.bf16.msra.mxu0 0
  %151 = vmatprep.subr.bf16.mxu0 0
  %152 = vmatpush1.bf16.msra.mxu0 0
  %153 = vmatprep.subr.bf16.mxu0 0
  %154 = vmatpush1.bf16.msra.mxu0 0
  %155 = vmatprep.subr.bf16.mxu0 0
  %156 = vmatpush1.bf16.msra.mxu0 0
  %157 = vmatprep.subr.bf16.mxu0 0
  %158 = vmatpush1.bf16.msra.mxu0 0
  %159 = vmatprep.subr.bf16.mxu0 0
  %160 = vmatpush1.bf16.msra.mxu0 0
  %161 = vmatprep.subr.bf16.mxu0 0
  %162 = vmatpush1.bf16.msra.mxu0 0
  %163 = vmatprep.subr.bf16.mxu0 0
  %164 = vmatpush1.bf16.msra.mxu0 0
  %165 = vmatprep.subr.bf16.mxu0 0
  %166 = vmatpush1.bf16.msra.mxu0 0
  %167 = vmatprep.subr.bf16.mxu0 0
  %168 = vmatpush1.bf16.msra.mxu0 0
  %169 = vmatprep.subr.bf16.mxu0 0
  %170 = vmatpush1.bf16.msra.mxu0 0
  %171 = vmatprep.mubr.bf16.mxu0 0
  %172 = vmatmul.mubr.bf16.gmra.mrb[0].mxu0 %v121
  %v173 = vpop.f32.mrb[0].mxu0
  %v174 = vadd.f32 %v42, %v173
  %v175 = vpop.f32.mrb[0].mxu0
  %v176 = vadd.f32 %v42, %v175
  %v177 = vpop.f32.mrb[0].mxu0
  %v178 = vadd.f32 %v47, %v177
  %v179 = vpop.f32.mrb[0].mxu0
  %v180 = vadd.f32 %v47, %v179
  %181 = vmatprep.mubr.bf16.mxu0 0
  %182 = vmatmul.mubr.bf16.gmra.mrb[0].mxu0 %v124
  %v183 = vpop.f32.mrb[0].mxu0
  %v184 = vadd.f32 %v52, %v183
  %v185 = vpop.f32.mrb[0].mxu0
  %v186 = vadd.f32 %v52, %v185
  %v187 = vpop.f32.mrb[0].mxu0
  %v188 = vadd.f32 %v57, %v187
  %v189 = vpop.f32.mrb[0].mxu0
  %v190 = vadd.f32 %v57, %v189
  %191 = vdwg.mxu0
  %192 = vmatprep.subr.bf16.mxu0 %v102
  %193 = vmatpush1.bf16.msra.mxu0 %v101
  %194 = vmatprep.subr.bf16.mxu0 %v106
  %195 = vmatpush1.bf16.msra.mxu0 %v105
  %196 = vmatprep.subr.bf16.mxu0 %v137
  %197 = vmatpush1.bf16.msra.mxu0 %v134
  %198 = vmatprep.subr.bf16.mxu0 0
  %199 = vmatpush1.bf16.msra.mxu0 0
  %200 = vmatprep.subr.bf16.mxu0 0
  %201 = vmatpush1.bf16.msra.mxu0 0
  %202 = vmatprep.subr.bf16.mxu0 0
  %203 = vmatpush1.bf16.msra.mxu0 0
  %204 = vmatprep.subr.bf16.mxu0 0
  %205 = vmatpush1.bf16.msra.mxu0 0
  %206 = vmatprep.subr.bf16.mxu0 0
  %207 = vmatpush1.bf16.msra.mxu0 0
  %208 = vmatprep.subr.bf16.mxu0 0
  %209 = vmatpush1.bf16.msra.mxu0 0
  %210 = vmatprep.subr.bf16.mxu0 0
  %211 = vmatpush1.bf16.msra.mxu0 0
  %212 = vmatprep.subr.bf16.mxu0 0
  %213 = vmatpush1.bf16.msra.mxu0 0
  %214 = vmatprep.subr.bf16.mxu0 0
  %215 = vmatpush1.bf16.msra.mxu0 0
  %216 = vmatprep.subr.bf16.mxu0 0
  %217 = vmatpush1.bf16.msra.mxu0 0
  %218 = vmatprep.subr.bf16.mxu0 0
  %219 = vmatpush1.bf16.msra.mxu0 0
  %220 = vmatprep.subr.bf16.mxu0 0
  %221 = vmatpush1.bf16.msra.mxu0 0
  %222 = vmatprep.subr.bf16.mxu0 0
  %223 = vmatpush1.bf16.msra.mxu0 0
  %224 = vmatprep.mubr.bf16.mxu0 0
  %225 = vmatmul.mubr.bf16.gmra.mrb[0].mxu0 %v121
  %v226 = vpop.f32.mrb[0].mxu0
  %v227 = vadd.f32 %v42, %v226
  %v228 = vpop.f32.mrb[0].mxu0
  %v229 = vadd.f32 %v42, %v228
  %v230 = vpop.f32.mrb[0].mxu0
  %v231 = vadd.f32 %v47, %v230
  %v232 = vpop.f32.mrb[0].mxu0
  %v233 = vadd.f32 %v47, %v232
  %234 = vmatprep.mubr.bf16.mxu0 0
  %235 = vmatmul.mubr.bf16.gmra.mrb[0].mxu0 %v124
  %v236 = vpop.f32.mrb[0].mxu0
  %v237 = vadd.f32 %v52, %v236
  %v238 = vpop.f32.mrb[0].mxu0
  %v239 = vadd.f32 %v52, %v238
  %v240 = vpop.f32.mrb[0].mxu0
  %v241 = vadd.f32 %v57, %v240
  %v242 = vpop.f32.mrb[0].mxu0
  %v243 = vadd.f32 %v57, %v242
  %244 = vdwg.mxu0
  %v245 = vmax.f32 %v174, 0.0
  %v246 = vmax.f32 %v176, 0.0
  %v247 = vmax.f32 %v227, 0.0
  %v248 = vmax.f32 %v229, 0.0
  %v249 = vmax.f32 %v178, 0.0
  %v250 = vmax.f32 %v180, 0.0
  %v251 = vmax.f32 %v231, 0.0
  %v252 = vmax.f32 %v233, 0.0
  %v253 = vmax.f32 %v184, 0.0
  %v254 = vmax.f32 %v186, 0.0
  %v255 = vmax.f32 %v237, 0.0
  %v256 = vmax.f32 %v239, 0.0
  %v257 = vmax.f32 %v188, 0.0
  %v258 = vmax.f32 %v190, 0.0
  %v259 = vmax.f32 %v241, 0.0
  %v260 = vmax.f32 %v243, 0.0
  %v261 = vld [vmem:[%s3] sm:$0xf]
  %v262 = vpack.c.bf16 %v249, %v245
  %v263 = vpack.c.bf16 %v250, %v246
  %v264 = vpack.c.bf16 %v251, %v247
  %v265 = vpack.c.bf16 %v252, %v248
  %v266 = vpack.c.bf16 %v257, %v253
  %v267 = vpack.c.bf16 %v258, %v254
  %v268 = vpack.c.bf16 %v259, %v255
  %v269 = vpack.c.bf16 %v260, %v256
  %v270 = vld [vmem:[%s4] sm:$0xff]
  %272 = vset.pattern.permute.xlu0 0
  %273 = vperm.xlu0 %272, %v270
  %v274 = vpop.permute.xlu0 %273
  %vm276 = vcmask 261120
  %v278 = vsel %vm276, %v261, 0
  %280 = vmatprep.subr.bf16.mxu0 %v263
  %281 = vmatpush1.bf16.msra.mxu0 %v262
  %282 = vmatprep.subr.bf16.mxu0 %v267
  %283 = vmatpush1.bf16.msra.mxu0 %v266
  %284 = vmatprep.subr.bf16.mxu0 0
  %285 = vmatpush1.bf16.msra.mxu0 0
  %286 = vmatprep.subr.bf16.mxu0 0
  %287 = vmatpush1.bf16.msra.mxu0 0
  %288 = vmatprep.subr.bf16.mxu0 0
  %289 = vmatpush1.bf16.msra.mxu0 0
  %290 = vmatprep.subr.bf16.mxu0 0
  %291 = vmatpush1.bf16.msra.mxu0 0
  %292 = vmatprep.subr.bf16.mxu0 0
  %293 = vmatpush1.bf16.msra.mxu0 0
  %294 = vmatprep.subr.bf16.mxu0 0
  %295 = vmatpush1.bf16.msra.mxu0 0
  %296 = vmatprep.subr.bf16.mxu0 0
  %297 = vmatpush1.bf16.msra.mxu0 0
  %298 = vmatprep.subr.bf16.mxu0 0
  %299 = vmatpush1.bf16.msra.mxu0 0
  %300 = vmatprep.subr.bf16.mxu0 0
  %301 = vmatpush1.bf16.msra.mxu0 0
  %302 = vmatprep.subr.bf16.mxu0 0
  %303 = vmatpush1.bf16.msra.mxu0 0
  %304 = vmatprep.subr.bf16.mxu0 0
  %305 = vmatpush1.bf16.msra.mxu0 0
  %306 = vmatprep.subr.bf16.mxu0 0
  %307 = vmatpush1.bf16.msra.mxu0 0
  %308 = vmatprep.subr.bf16.mxu0 0
  %309 = vmatpush1.bf16.msra.mxu0 0
  %310 = vmatprep.subr.bf16.mxu0 0
  %311 = vmatpush1.bf16.msra.mxu0 0
  %312 = vmatprep.mubr.bf16.mxu0 0
  %313 = vmatmul.mubr.bf16.gmra.mrb[0].mxu0 %v278
  %v314 = vpop.f32.mrb[0].mxu0
  %v315 = vadd.f32 %v274, %v314
  %v316 = vpop.f32.mrb[0].mxu0
  %v317 = vadd.f32 %v274, %v316
  %v318 = vpop.f32.mrb[0].mxu0
  %v319 = vpop.f32.mrb[0].mxu0
  %320 = vdwg.mxu0
  %321 = vmatprep.subr.bf16.mxu0 %v265
  %322 = vmatpush1.bf16.msra.mxu0 %v264
  %323 = vmatprep.subr.bf16.mxu0 %v269
  %324 = vmatpush1.bf16.msra.mxu0 %v268
  %325 = vmatprep.subr.bf16.mxu0 0
  %326 = vmatpush1.bf16.msra.mxu0 0
  %327 = vmatprep.subr.bf16.mxu0 0
  %328 = vmatpush1.bf16.msra.mxu0 0
  %329 = vmatprep.subr.bf16.mxu0 0
  %330 = vmatpush1.bf16.msra.mxu0 0
  %331 = vmatprep.subr.bf16.mxu0 0
  %332 = vmatpush1.bf16.msra.mxu0 0
  %333 = vmatprep.subr.bf16.mxu0 0
  %334 = vmatpush1.bf16.msra.mxu0 0
  %335 = vmatprep.subr.bf16.mxu0 0
  %336 = vmatpush1.bf16.msra.mxu0 0
  %337 = vmatprep.subr.bf16.mxu0 0
  %338 = vmatpush1.bf16.msra.mxu0 0
  %339 = vmatprep.subr.bf16.mxu0 0
  %340 = vmatpush1.bf16.msra.mxu0 0
  %341 = vmatprep.subr.bf16.mxu0 0
  %342 = vmatpush1.bf16.msra.mxu0 0
  %343 = vmatprep.subr.bf16.mxu0 0
  %344 = vmatpush1.bf16.msra.mxu0 0
  %345 = vmatprep.subr.bf16.mxu0 0
  %346 = vmatpush1.bf16.msra.mxu0 0
  %347 = vmatprep.subr.bf16.mxu0 0
  %348 = vmatpush1.bf16.msra.mxu0 0
  %349 = vmatprep.subr.bf16.mxu0 0
  %350 = vmatpush1.bf16.msra.mxu0 0
  %351 = vmatprep.subr.bf16.mxu0 0
  %352 = vmatpush1.bf16.msra.mxu0 0
  %353 = vmatprep.mubr.bf16.mxu0 0
  %354 = vmatmul.mubr.bf16.gmra.mrb[0].mxu0 %v278
  %v355 = vpop.f32.mrb[0].mxu0
  %v356 = vadd.f32 %v274, %v355
  %v357 = vpop.f32.mrb[0].mxu0
  %v358 = vadd.f32 %v274, %v357
  %v359 = vpop.f32.mrb[0].mxu0
  %v360 = vpop.f32.mrb[0].mxu0
  %361 = vdwg.mxu0
  %362 = vst [vmem:[%s5] sm:$0xff] %v315
  %363 = vst [vmem:[%s5 + $0x8] sm:$0xff] %v317
  %s364 = scalar_lea.vmem %s5, 16
  %365 = vst [vmem:[%s364] sm:$0xff] %v356
  %366 = vst [vmem:[%s364 + $0x8] sm:$0xff] %v358
  // Predicated region
  $region22: #{posenet_1branch.1} parent=0 // pred_check
    _
  $region23: #{posenet_1branch.1} parent=0 // pred_check_branch
    %368 = sbr.rel (0) target = $region25
  $region24: #{posenet_1branch.1} parent=0 // pred_region
    _
  $region25: #{posenet_1branch.1} parent=0 // pred_fallthru
    _
  // Predicated region
  $region26: #{posenet_1branch.1} parent=0 // pred_check
    _
  $region27: #{posenet_1branch.1} parent=0 // pred_check_branch
    %370 = sbr.rel (0) target = $region29
  $region28: #{posenet_1branch.1} parent=0 // pred_region
    _
  $region29: #{posenet_1branch.1} parent=0 // pred_fallthru
    _

</llo_original>
